<compile_context>
chip_gen: v5e
topology: v5e:2x2
jax: 0.10.0
libtpu: 0.0.40
codegen_flags: <defaults>
</compile_context>

<pallas_src>
import functools

import jax
import jax.numpy as jnp
from jax.experimental import pallas as pl
from jax.experimental.pallas import tpu as pltpu


def _entropy_kernel(pred_ref, prob_ref, sum_ref, cnt_ref, acc_ref, nz_ref,
                    *, tile_hw, hw):
    j = pl.program_id(1)
    nj = pl.num_programs(1)

    # Init per-batch vector accumulators (scratch persists across the
    # sequential HW axis; re-initialised at the start of every batch).
    @pl.when(j == 0)
    def _():
        acc_ref[...] = jnp.zeros_like(acc_ref)
        nz_ref[...] = jnp.zeros_like(nz_ref)

    x = pred_ref[0].astype(jnp.float32)   # (C, tile_hw) logits
    p = prob_ref[0].astype(jnp.float32)   # (C, tile_hw) pre-sigmoid probs

    # Numerically-stable softmax pieces over the class (sublane) axis.
    m = jnp.max(x, axis=0, keepdims=True)            # (1, tile_hw)
    xm = x - m
    e = jnp.exp(xm)                                  # EUP
    s = jnp.sum(e, axis=0, keepdims=True)            # (1, tile_hw)

    sig = jax.nn.sigmoid(p)                          # EUP

    # sum_c sig * softmax * log_softmax
    #   = (1/s) * [ sum_c sig*e*xm  -  log(s) * sum_c sig*e ]
    t = sig * e                                      # C multiplies
    sum_t = jnp.sum(t, axis=0, keepdims=True)        # (1, tile_hw)
    sum_tx = jnp.sum(t * xm, axis=0, keepdims=True)  # C multiplies + reduce
    de = (sum_tx - jnp.log(s) * sum_t) / s           # (1, tile_hw), O(T) work

    def _accum(d):
        acc_ref[...] = acc_ref[...] + d
        nz_ref[...] = nz_ref[...] + (d != 0.0).astype(jnp.int32)

    # Interior tiles are always fully valid -> no mask work in the hot path.
    @pl.when(j < nj - 1)
    def _():
        _accum(de)

    # Last tile: mask the ragged tail (if any), accumulate, then do the single
    # per-batch epilogue reduce + lane-dense (128-wide) store.
    @pl.when(j == nj - 1)
    def _():
        d = de
        if hw % tile_hw != 0:  # static: only traced when HW is ragged
            col = j * tile_hw + jax.lax.broadcasted_iota(jnp.int32, de.shape, 1)
            d = jnp.where(col < hw, de, 0.0)
        _accum(d)
        sum_ref[...] = jnp.broadcast_to(jnp.sum(acc_ref[...]), sum_ref.shape)
        cnt_ref[...] = jnp.broadcast_to(jnp.sum(nz_ref[...]), cnt_ref.shape)


def distance_min_entropy(pred, pred_prob, *, tile_hw=8192):
    """pred, pred_prob: (B, C, H, W) float arrays (NCHW, matching PyTorch)."""
    B, C, H, W = pred.shape
    assert pred_prob.shape == pred.shape
    HW = H * W

    # Free reshape: NCHW is already contiguous as (B, C, H*W). No transpose.
    pred3 = pred.reshape(B, C, HW)
    prob3 = pred_prob.reshape(B, C, HW)

    # Lane tile: multiple of 128 (or HW rounded up to 128); the partial last
    # block is handled by the in-kernel mask instead of padding in HBM.
    tile_hw = min(tile_hw, pl.cdiv(HW, 128) * 128)
    grid = (B, pl.cdiv(HW, tile_hw))

    kernel = functools.partial(_entropy_kernel, tile_hw=tile_hw, hw=HW)

    sum_parts, cnt_parts = pl.pallas_call(
        kernel,
        out_shape=(
            jax.ShapeDtypeStruct((B, 1, 128), jnp.float32),
            jax.ShapeDtypeStruct((B, 1, 128), jnp.int32),
        ),
        grid_spec=pltpu.PrefetchScalarGridSpec(
            num_scalar_prefetch=0,
            grid=grid,
            in_specs=[
                pl.BlockSpec((1, C, tile_hw), lambda b, j: (b, 0, j)),
                pl.BlockSpec((1, C, tile_hw), lambda b, j: (b, 0, j)),
            ],
            out_specs=[
                pl.BlockSpec((1, 1, 128), lambda b, j: (b, 0, 0)),
                pl.BlockSpec((1, 1, 128), lambda b, j: (b, 0, 0)),
            ],
            scratch_shapes=[
                pltpu.VMEM((1, tile_hw), jnp.float32),   # per-lane sum acc
                pltpu.VMEM((1, tile_hw), jnp.int32),     # per-lane nz count
            ],
        ),
        compiler_params=pltpu.CompilerParams(
            dimension_semantics=("parallel", "arbitrary")),
    )(pred3, prob3)

    total_sum = jnp.sum(sum_parts[:, 0, 0])
    total_cnt = jnp.sum(cnt_parts[:, 0, 0])
    # Same divide-by-count semantics as the PyTorch reference (inf if cnt==0).
    return -total_sum / total_cnt.astype(jnp.float32)


def _reference(pred, pred_prob):
    x_logsm = jax.nn.log_softmax(pred, axis=1)
    x_sm = jax.nn.softmax(pred, axis=1)
    p = jax.nn.sigmoid(pred_prob)
    de = jnp.sum(p * x_sm * x_logsm, axis=1)
    return -jnp.sum(de) / jnp.count_nonzero(de).astype(jnp.float32)


if __name__ == "__main__":
    numclass = 21
    key = jax.random.PRNGKey(0)

    # Case 1: lane-aligned spatial size (HW % 128 == 0).
    B, H, W = 2, 16, 16
    k1, k2, key = jax.random.split(key, 3)
    pred = jax.random.normal(k1, (B, numclass, H, W), dtype=jnp.float32)
    pred_prob = jax.random.normal(k2, (B, numclass, H, W), dtype=jnp.float32)
    loss = jax.block_until_ready(distance_min_entropy(pred, pred_prob))
    ref = _reference(pred, pred_prob)
    assert jnp.allclose(loss, ref, rtol=5e-4, atol=1e-6), (loss, ref)

    # Case 2: ragged spatial size (exercises the in-kernel tail mask and the
    # multi-tile accumulation path).
    B2, H2, W2 = 2, 13, 11
    k3, k4, key = jax.random.split(key, 3)
    pred2 = jax.random.normal(k3, (B2, numclass, H2, W2), dtype=jnp.float32)
    prob2 = jax.random.normal(k4, (B2, numclass, H2, W2), dtype=jnp.float32)
    loss2 = jax.block_until_ready(distance_min_entropy(pred2, prob2, tile_hw=128))
    ref2 = _reference(pred2, prob2)
    assert jnp.allclose(loss2, ref2, rtol=5e-4, atol=1e-6), (loss2, ref2)

    print("KERNEL_OK")
</pallas_src>

<mosaic_0001>
module attributes {stable_mosaic.version = 11 : i64} {
  func.func @_entropy_kernel(%arg0: i32, %arg1: i32, %arg2: memref<1x21x256xf32, #tpu.memory_space<vmem>>, %arg3: memref<1x21x256xf32, #tpu.memory_space<vmem>>, %arg4: memref<1x1x128xf32, #tpu.memory_space<vmem>>, %arg5: memref<1x1x128xi32, #tpu.memory_space<vmem>>, %arg6: memref<1x256xf32, #tpu.memory_space<vmem>>, %arg7: memref<1x256xi32, #tpu.memory_space<vmem>>) attributes {dimension_semantics = [#tpu.dimension_semantics<parallel>, #tpu.dimension_semantics<arbitrary>], iteration_bounds = array<i64: 2, 1>, scalar_prefetch = 0 : i64, scratch_operands = 2 : i64, tpu.core_type = #tpu.core_type<tc>, window_params = [{transform_indices = @transform_0, window_bounds = array<i64: 1, 21, 256>}, {transform_indices = @transform_1, window_bounds = array<i64: 1, 21, 256>}, {transform_indices = @transform_2, window_bounds = array<i64: 1, 1, 128>}, {transform_indices = @transform_3, window_bounds = array<i64: 1, 1, 128>}]} {
    %c0_i32 = arith.constant 0 : i32
    %0 = arith.cmpi eq, %arg1, %c0_i32 : i32
    %1 = arith.extui %0 : i1 to i32
    %c0_i32_0 = arith.constant 0 : i32
    %2 = arith.cmpi ne, %1, %c0_i32_0 : i32
    scf.if %2 {
      %cst_14 = arith.constant 0.000000e+00 : f32
      %35 = vector.broadcast %cst_14 : f32 to vector<1x256xf32>
      %c0_15 = arith.constant 0 : index
      %c0_16 = arith.constant 0 : index
      %36 = vector.load %arg6[%c0_15, %c0_16] : memref<1x256xf32, #tpu.memory_space<vmem>>, vector<1x256xf32>
      tpu.vector_store %arg6[%c0_15, %c0_16], %35 {strides = array<i32>} : memref<1x256xf32, #tpu.memory_space<vmem>>, vector<1x256xf32>,
      %c0_i32_17 = arith.constant 0 : i32
      %37 = vector.broadcast %c0_i32_17 : i32 to vector<1x256xi32>
      %c0_18 = arith.constant 0 : index
      %c0_19 = arith.constant 0 : index
      %38 = vector.load %arg7[%c0_18, %c0_19] : memref<1x256xi32, #tpu.memory_space<vmem>>, vector<1x256xi32>
      tpu.vector_store %arg7[%c0_18, %c0_19], %37 {strides = array<i32>} : memref<1x256xi32, #tpu.memory_space<vmem>>, vector<1x256xi32>,
    } else {
    }
    %c0 = arith.constant 0 : index
    %c0_1 = arith.constant 0 : index
    %c0_2 = arith.constant 0 : index
    %3 = vector.load %arg2[%c0, %c0_1, %c0_2] : memref<1x21x256xf32, #tpu.memory_space<vmem>>, vector<1x21x256xf32>
    %4 = vector.shape_cast %3 : vector<1x21x256xf32> to vector<21x256xf32>
    %c0_3 = arith.constant 0 : index
    %c0_4 = arith.constant 0 : index
    %c0_5 = arith.constant 0 : index
    %5 = vector.load %arg3[%c0_3, %c0_4, %c0_5] : memref<1x21x256xf32, #tpu.memory_space<vmem>>, vector<1x21x256xf32>
    %6 = vector.shape_cast %5 : vector<1x21x256xf32> to vector<21x256xf32>
    %cst = arith.constant dense<0xFF800000> : vector<256xf32>
    %7 = vector.multi_reduction <maximumf>, %4, %cst [0] : vector<21x256xf32> to vector<256xf32>
    %8 = vector.shape_cast %7 : vector<256xf32> to vector<1x256xf32>
    %9 = vector.broadcast %8 : vector<1x256xf32> to vector<21x256xf32>
    %10 = arith.subf %4, %9 : vector<21x256xf32>
    %11 = math.exp %10 : vector<21x256xf32>
    %cst_6 = arith.constant dense<0.000000e+00> : vector<256xf32>
    %12 = vector.multi_reduction <add>, %11, %cst_6 [0] : vector<21x256xf32> to vector<256xf32>
    %13 = vector.shape_cast %12 : vector<256xf32> to vector<1x256xf32>
    %14 = arith.negf %6 : vector<21x256xf32>
    %15 = math.exp %14 : vector<21x256xf32>
    %cst_7 = arith.constant 1.000000e+00 : f32
    %16 = vector.broadcast %cst_7 : f32 to vector<21x256xf32>
    %17 = arith.addf %16, %15 : vector<21x256xf32>
    %18 = arith.divf %16, %17 : vector<21x256xf32>
    %19 = arith.mulf %18, %11 : vector<21x256xf32>
    %cst_8 = arith.constant dense<0.000000e+00> : vector<256xf32>
    %20 = vector.multi_reduction <add>, %19, %cst_8 [0] : vector<21x256xf32> to vector<256xf32>
    %21 = vector.shape_cast %20 : vector<256xf32> to vector<1x256xf32>
    %22 = arith.mulf %19, %10 : vector<21x256xf32>
    %cst_9 = arith.constant dense<0.000000e+00> : vector<256xf32>
    %23 = vector.multi_reduction <add>, %22, %cst_9 [0] : vector<21x256xf32> to vector<256xf32>
    %24 = vector.shape_cast %23 : vector<256xf32> to vector<1x256xf32>
    %25 = math.log %13 : vector<1x256xf32>
    %26 = arith.mulf %25, %21 : vector<1x256xf32>
    %27 = arith.subf %24, %26 : vector<1x256xf32>
    %28 = arith.divf %27, %13 : vector<1x256xf32>
    %c0_i32_10 = arith.constant 0 : i32
    %29 = arith.cmpi slt, %arg1, %c0_i32_10 : i32
    %30 = arith.extui %29 : i1 to i32
    %c0_i32_11 = arith.constant 0 : i32
    %31 = arith.cmpi ne, %30, %c0_i32_11 : i32
    scf.if %31 {
      %c0_14 = arith.constant 0 : index
      %c0_15 = arith.constant 0 : index
      %35 = vector.load %arg6[%c0_14, %c0_15] : memref<1x256xf32, #tpu.memory_space<vmem>>, vector<1x256xf32>
      %36 = arith.addf %35, %28 : vector<1x256xf32>
      %c0_16 = arith.constant 0 : index
      %c0_17 = arith.constant 0 : index
      %37 = vector.load %arg6[%c0_16, %c0_17] : memref<1x256xf32, #tpu.memory_space<vmem>>, vector<1x256xf32>
      tpu.vector_store %arg6[%c0_16, %c0_17], %36 {strides = array<i32>} : memref<1x256xf32, #tpu.memory_space<vmem>>, vector<1x256xf32>,
      %c0_18 = arith.constant 0 : index
      %c0_19 = arith.constant 0 : index
      %38 = vector.load %arg7[%c0_18, %c0_19] : memref<1x256xi32, #tpu.memory_space<vmem>>, vector<1x256xi32>
      %cst_20 = arith.constant 0.000000e+00 : f32
      %39 = vector.broadcast %cst_20 : f32 to vector<1x256xf32>
      %40 = arith.cmpf one, %28, %39 : vector<1x256xf32>
      %41 = arith.extui %40 : vector<1x256xi1> to vector<1x256xi32>
      %42 = arith.addi %38, %41 : vector<1x256xi32>
      %c0_21 = arith.constant 0 : index
      %c0_22 = arith.constant 0 : index
      %43 = vector.load %arg7[%c0_21, %c0_22] : memref<1x256xi32, #tpu.memory_space<vmem>>, vector<1x256xi32>
      tpu.vector_store %arg7[%c0_21, %c0_22], %42 {strides = array<i32>} : memref<1x256xi32, #tpu.memory_space<vmem>>, vector<1x256xi32>,
    } else {
    }
    %c0_i32_12 = arith.constant 0 : i32
    %32 = arith.cmpi eq, %arg1, %c0_i32_12 : i32
    %33 = arith.extui %32 : i1 to i32
    %c0_i32_13 = arith.constant 0 : i32
    %34 = arith.cmpi ne, %33, %c0_i32_13 : i32
    scf.if %34 {
      %c0_14 = arith.constant 0 : index
      %c0_15 = arith.constant 0 : index
      %35 = vector.load %arg6[%c0_14, %c0_15] : memref<1x256xf32, #tpu.memory_space<vmem>>, vector<1x256xf32>
      %36 = arith.addf %35, %28 : vector<1x256xf32>
      %c0_16 = arith.constant 0 : index
      %c0_17 = arith.constant 0 : index
      %37 = vector.load %arg6[%c0_16, %c0_17] : memref<1x256xf32, #tpu.memory_space<vmem>>, vector<1x256xf32>
      tpu.vector_store %arg6[%c0_16, %c0_17], %36 {strides = array<i32>} : memref<1x256xf32, #tpu.memory_space<vmem>>, vector<1x256xf32>,
      %c0_18 = arith.constant 0 : index
      %c0_19 = arith.constant 0 : index
      %38 = vector.load %arg7[%c0_18, %c0_19] : memref<1x256xi32, #tpu.memory_space<vmem>>, vector<1x256xi32>
      %cst_20 = arith.constant 0.000000e+00 : f32
      %39 = vector.broadcast %cst_20 : f32 to vector<1x256xf32>
      %40 = arith.cmpf one, %28, %39 : vector<1x256xf32>
      %41 = arith.extui %40 : vector<1x256xi1> to vector<1x256xi32>
      %42 = arith.addi %38, %41 : vector<1x256xi32>
      %c0_21 = arith.constant 0 : index
      %c0_22 = arith.constant 0 : index
      %43 = vector.load %arg7[%c0_21, %c0_22] : memref<1x256xi32, #tpu.memory_space<vmem>>, vector<1x256xi32>
      tpu.vector_store %arg7[%c0_21, %c0_22], %42 {strides = array<i32>} : memref<1x256xi32, #tpu.memory_space<vmem>>, vector<1x256xi32>,
      %c0_23 = arith.constant 0 : index
      %c0_24 = arith.constant 0 : index
      %44 = vector.load %arg6[%c0_23, %c0_24] : memref<1x256xf32, #tpu.memory_space<vmem>>, vector<1x256xf32>
      %45 = vector.shape_cast %44 : vector<1x256xf32> to vector<1x1x256xf32>
      %cst_25 = arith.constant dense<0.000000e+00> : vector<1xf32>
      %46 = vector.multi_reduction <add>, %45, %cst_25 [1, 2] : vector<1x1x256xf32> to vector<1xf32>
      %47 = vector.shape_cast %46 : vector<1xf32> to vector<1x1x1xf32>
      %48 = vector.extract %47[0, 0, 0] : f32 from vector<1x1x1xf32>
      %49 = vector.broadcast %48 : f32 to vector<1x1x128xf32>
      %c0_26 = arith.constant 0 : index
      %c0_27 = arith.constant 0 : index
      %c0_28 = arith.constant 0 : index
      %50 = vector.load %arg4[%c0_26, %c0_27, %c0_28] : memref<1x1x128xf32, #tpu.memory_space<vmem>>, vector<1x1x128xf32>
      tpu.vector_store %arg4[%c0_26, %c0_27, %c0_28], %49 {strides = array<i32>} : memref<1x1x128xf32, #tpu.memory_space<vmem>>, vector<1x1x128xf32>,
      %c0_29 = arith.constant 0 : index
      %c0_30 = arith.constant 0 : index
      %51 = vector.load %arg7[%c0_29, %c0_30] : memref<1x256xi32, #tpu.memory_space<vmem>>, vector<1x256xi32>
      %52 = vector.shape_cast %51 : vector<1x256xi32> to vector<1x1x256xi32>
      %cst_31 = arith.constant dense<0> : vector<1xi32>
      %53 = vector.multi_reduction <add>, %52, %cst_31 [1, 2] : vector<1x1x256xi32> to vector<1xi32>
      %54 = vector.shape_cast %53 : vector<1xi32> to vector<1x1x1xi32>
      %55 = vector.extract %54[0, 0, 0] : i32 from vector<1x1x1xi32>
      %56 = vector.broadcast %55 : i32 to vector<1x1x128xi32>
      %c0_32 = arith.constant 0 : index
      %c0_33 = arith.constant 0 : index
      %c0_34 = arith.constant 0 : index
      %57 = vector.load %arg5[%c0_32, %c0_33, %c0_34] : memref<1x1x128xi32, #tpu.memory_space<vmem>>, vector<1x1x128xi32>
      tpu.vector_store %arg5[%c0_32, %c0_33, %c0_34], %56 {strides = array<i32>} : memref<1x1x128xi32, #tpu.memory_space<vmem>>, vector<1x1x128xi32>,
    } else {
    }
    return
  }
  func.func @transform_0(%arg0: i32, %arg1: i32) -> (i32, i32, i32) {
    %c0_i32 = arith.constant 0 : i32
    %c0_i32_0 = arith.constant 0 : i32
    return %arg0, %c0_i32, %arg1 : i32, i32, i32
  }
  func.func @transform_1(%arg0: i32, %arg1: i32) -> (i32, i32, i32) {
    %c0_i32 = arith.constant 0 : i32
    %c0_i32_0 = arith.constant 0 : i32
    return %arg0, %c0_i32, %arg1 : i32, i32, i32
  }
  func.func @transform_2(%arg0: i32, %arg1: i32) -> (i32, i32, i32) {
    %c0_i32 = arith.constant 0 : i32
    %c0_i32_0 = arith.constant 0 : i32
    %c0_i32_1 = arith.constant 0 : i32
    return %arg0, %c0_i32, %c0_i32_0 : i32, i32, i32
  }
  func.func @transform_3(%arg0: i32, %arg1: i32) -> (i32, i32, i32) {
    %c0_i32 = arith.constant 0 : i32
    %c0_i32_0 = arith.constant 0 : i32
    %c0_i32_1 = arith.constant 0 : i32
    return %arg0, %c0_i32, %c0_i32_0 : i32, i32, i32
  }
}

</mosaic_0001>

<llo_original>
// kernel: tpu_custom_call.1
$region0: #{tpu_custom_call.1}
  #allocation0 [shape = 'u32[]', space=smem, size = 0x4, offset = 0x4, fixed_abs, tag = 'smem constant byte address 0x4 - core index']
  #allocation1 [shape = 'u32[72,128]{1,0:T(1,128)}', space=vmem, size = 0x9000, scoped, tag = 'internal scratch']
  #allocation2 [shape = 'f32[1,256]{1,0:T(1,128)}', space=vmem, size = 0x400, scoped, tag = 'scratch operand']
  #allocation3 [shape = 's32[1,256]{1,0:T(1,128)}', space=vmem, size = 0x400, scoped, tag = 'scratch operand']
  %s0 = inlined_call_operand.vmem [shape: f32[2,21,256], index: 0, kind: input, shape index: {}]
  %s1 = inlined_call_operand.vmem [shape: f32[2,21,256], index: 1, kind: input, shape index: {}]
  %s2 = inlined_call_operand.hbm [shape: f32[2,1,128], index: 2, kind: output, shape index: {0}]
  %s3 = inlined_call_operand.hbm [shape: s32[2,1,128], index: 3, kind: output, shape index: {1}]
  %4 = xla_tuple %s2, %s3
  %s5 = sld [smem:[#allocation0]]
  $region61: #{tpu_custom_call.1} parent=0
    _
  %s7 = ssub.s32 1, %s5
  %s8 = scalar_select 0, %s7, %s5
  $region1: #{tpu_custom_call.1} parent=0
    #allocation4 [shape = 'u8[1024]{0}', space=vmem, size = 0x400, scoped, tag = 'output window, operand 0']
    #allocation5 [shape = 's32[2]{0}', space=sflag, size = 0x8, scoped, tag = 'scoped memory for tpu_custom_call.1']
    #allocation6 [shape = 'u8[1024]{0}', space=vmem, size = 0x400, scoped, tag = 'output window, operand 1']
    #allocation7 [shape = 's32[2]{0}', space=sflag, size = 0x8, scoped, tag = 'scoped memory for tpu_custom_call.1']
    %9 = vsyncpa [#allocation5], 0
    %s10 = scalar_lea.sflag [#allocation5], 1
    %11 = vsyncpa %s10, 0
    %12 = vsyncpa [#allocation7], 0
    %s13 = scalar_lea.sflag [#allocation7], 1
    %14 = vsyncpa %s13, 0
    loop: start=0, step=1, limit=4
    $region2: #{tpu_custom_call.1} parent=1 // loop_pre_header
      _
    $region3: #{tpu_custom_call.1} parent=1 // loop_header
      %s16 = sphi 0, %s20
      %p17 = scmp.ge.s32.totalorder %s16, 4
      %s23 = sphi 0, %s35
      %s24 = sphi 0, %s31
      %s25 = sphi 0, %s23
      %s26 = sphi 0, %s24
      %s27 = sphi 0, %s25
      %s28 = sphi 0, %s26
      %s40 = sphi 0, %s42
      %s43 = sphi 0, %s40
      %s44 = sphi 0, %s43
      %s60 = sphi 0, %s44
      %s68 = sphi 0, %s70
      %s71 = sphi 0, %s68
      %s72 = sphi 0, %s71
      %s88 = sphi 0, %s72
      %s94 = sphi 0, %s96
      %s97 = sphi 0, %s94
      %s98 = sphi 0, %s97
      %s114 = sphi 0, %s98
      %s120 = sphi 0, %s122
      %s123 = sphi 0, %s120
      %s124 = sphi 0, %s123
      %s140 = sphi 0, %s124
    $region4: #{tpu_custom_call.1} parent=1 // loop_header_branch
      %19 = sbr.rel (%p17) target = $region8
    $region5: #{tpu_custom_call.1} parent=1 // loop_body
      %s21 = ssub.s32 %s16, 1
      %s22 = ssub.s32 %s16, 2
      %s29 = sadd.s32 1, %s24
      %p30 = scmp.ge.s32.totalorder %s29, 1
      %s31 = scalar_select %p30, 0, %s29
      %s32 = sadd.s32 1, %s23
      %s33 = scalar_select %p30, %s32, %s23
      %p34 = scmp.ge.s32.totalorder %s33, 2
      %s35 = scalar_select %p34, 0, %s33
      %s36 = ssub.s32 %s23, %s35
      %s37 = ssub.s32 %s24, %s31
      %s38 = sor.u32 %s36, %s37
      %p39 = scmp.eq.s32.totalorder %s38, 0
      %s41 = sadd.s32 %s40, 1
      %s42 = scalar_select %p39, %s40, %s41
      %p45 = pneg %p39
      %p46 = scmp.eq.s32.totalorder %s16, 1
      %p47 = por %p45, %p46
      %p48 = scmp.ne.s32.totalorder %s40, %s43
      %p49 = scmp.eq.s32.totalorder %s16, 0
      %p50 = por %p48, %p49
      %p51 = scmp.ne.s32.totalorder %s40, %s43
      %p52 = scmp.eq.s32.totalorder %s21, 1
      %p53 = por %p51, %p52
      %p54 = scmp.ne.s32.totalorder %s43, %s44
      %p55 = scmp.eq.s32.totalorder %s21, 0
      %p56 = por %p54, %p55
      %p57 = scmp.ne.s32.totalorder %s43, %s44
      %p58 = scmp.eq.s32.totalorder %s22, 1
      %p59 = por %p57, %p58
      %p61 = scmp.ne.s32.totalorder %s44, %s60
      %p62 = scmp.eq.s32.totalorder %s22, 0
      %p63 = por %p61, %p62
      %s64 = ssub.s32 %s23, %s35
      %s65 = ssub.s32 %s24, %s31
      %s66 = sor.u32 %s64, %s65
      %p67 = scmp.eq.s32.totalorder %s66, 0
      %s69 = sadd.s32 %s68, 1
      %s70 = scalar_select %p67, %s68, %s69
      %p73 = pneg %p67
      %p74 = scmp.eq.s32.totalorder %s16, 1
      %p75 = por %p73, %p74
      %p76 = scmp.ne.s32.totalorder %s68, %s71
      %p77 = scmp.eq.s32.totalorder %s16, 0
      %p78 = por %p76, %p77
      %p79 = scmp.ne.s32.totalorder %s68, %s71
      %p80 = scmp.eq.s32.totalorder %s21, 1
      %p81 = por %p79, %p80
      %p82 = scmp.ne.s32.totalorder %s71, %s72
      %p83 = scmp.eq.s32.totalorder %s21, 0
      %p84 = por %p82, %p83
      %p85 = scmp.ne.s32.totalorder %s71, %s72
      %p86 = scmp.eq.s32.totalorder %s22, 1
      %p87 = por %p85, %p86
      %p89 = scmp.ne.s32.totalorder %s72, %s88
      %p90 = scmp.eq.s32.totalorder %s22, 0
      %p91 = por %p89, %p90
      %s92 = ssub.s32 %s23, %s35
      %p93 = scmp.eq.s32.totalorder %s92, 0
      %s95 = sadd.s32 %s94, 1
      %s96 = scalar_select %p93, %s94, %s95
      %p99 = pneg %p93
      %p100 = scmp.eq.s32.totalorder %s16, 1
      %p101 = por %p99, %p100
      %p102 = scmp.ne.s32.totalorder %s94, %s97
      %p103 = scmp.eq.s32.totalorder %s16, 0
      %p104 = por %p102, %p103
      %p105 = scmp.ne.s32.totalorder %s94, %s97
      %p106 = scmp.eq.s32.totalorder %s21, 1
      %p107 = por %p105, %p106
      %p108 = scmp.ne.s32.totalorder %s97, %s98
      %p109 = scmp.eq.s32.totalorder %s21, 0
      %p110 = por %p108, %p109
      %p111 = scmp.ne.s32.totalorder %s97, %s98
      %p112 = scmp.eq.s32.totalorder %s22, 1
      %p113 = por %p111, %p112
      %p115 = scmp.ne.s32.totalorder %s98, %s114
      %p116 = scmp.eq.s32.totalorder %s22, 0
      %p117 = por %p115, %p116
      %s118 = ssub.s32 %s23, %s35
      %p119 = scmp.eq.s32.totalorder %s118, 0
      %s121 = sadd.s32 %s120, 1
      %s122 = scalar_select %p119, %s120, %s121
      %p125 = pneg %p119
      %p126 = scmp.eq.s32.totalorder %s16, 1
      %p127 = por %p125, %p126
      %p128 = scmp.ne.s32.totalorder %s120, %s123
      %p129 = scmp.eq.s32.totalorder %s16, 0
      %p130 = por %p128, %p129
      %p131 = scmp.ne.s32.totalorder %s120, %s123
      %p132 = scmp.eq.s32.totalorder %s21, 1
      %p133 = por %p131, %p132
      %p134 = scmp.ne.s32.totalorder %s123, %s124
      %p135 = scmp.eq.s32.totalorder %s21, 0
      %p136 = por %p134, %p135
      %p137 = scmp.ne.s32.totalorder %s123, %s124
      %p138 = scmp.eq.s32.totalorder %s22, 1
      %p139 = por %p137, %p138
      %p141 = scmp.ne.s32.totalorder %s124, %s140
      %p142 = scmp.eq.s32.totalorder %s22, 0
      %p143 = por %p141, %p142
      %p144 = scmp.le.s32.totalorder 1, %s16
      %p145 = scmp.lt.s32.totalorder %s16, 3
      %p146 = pnand %p144, %p145
      %p147 = pneg %p146
      // Predicated region
      $region9: #{tpu_custom_call.1} parent=5 // pred_check
        _
      $region10: #{tpu_custom_call.1} parent=5 // pred_check_branch
        %149 = sbr.rel (%p146) target = $region12
      $region11: #{tpu_custom_call.1} parent=5 // pred_region
        %s150 = ssub.s32 %s16, 1
      $region12: #{tpu_custom_call.1} parent=5 // pred_fallthru
        _
      %p151 = scmp.lt.s32.totalorder %s16, 2
      // Predicated region
      $region13: #{tpu_custom_call.1} parent=5 // pred_check
        %p152 = pneg %p151
      $region14: #{tpu_custom_call.1} parent=5 // pred_check_branch
        %154 = sbr.rel (%p152) target = $region16
      $region15: #{tpu_custom_call.1} parent=5 // pred_region
        // Predicated region
        $region17: #{tpu_custom_call.1} parent=15 // pred_check
          %p155 = pneg %p50
        $region18: #{tpu_custom_call.1} parent=15 // pred_check_branch
          %157 = sbr.rel (%p155) target = $region20
        $region19: #{tpu_custom_call.1} parent=15 // pred_region
          %s158 = smul.u32 2, %s24
          %p159 = scmp.lt.s32.totalorder %s23, 1
          %s160 = scalar_select %p159, %s23, 1
          %p161 = scmp.lt.s32.totalorder %s158, 1
          %s162 = scalar_select %p161, %s158, 1
          %s163 = smul.addr %s160, 6
          %s164 = sadd.s32 %s162, %s163
          %s165 = smul.addr %s164, 8
          %s166 = scalar_lea.vmem %s0, %s165
          %s167 = smul.u32 2, %s24
        $region20: #{tpu_custom_call.1} parent=15 // pred_fallthru
          _
        // Predicated region
        $region21: #{tpu_custom_call.1} parent=15 // pred_check
          %p168 = pneg %p78
        $region22: #{tpu_custom_call.1} parent=15 // pred_check_branch
          %170 = sbr.rel (%p168) target = $region24
        $region23: #{tpu_custom_call.1} parent=15 // pred_region
          %s171 = smul.u32 2, %s24
          %p172 = scmp.lt.s32.totalorder %s23, 1
          %s173 = scalar_select %p172, %s23, 1
          %p174 = scmp.lt.s32.totalorder %s171, 1
          %s175 = scalar_select %p174, %s171, 1
          %s176 = smul.addr %s173, 6
          %s177 = sadd.s32 %s175, %s176
          %s178 = smul.addr %s177, 8
          %s179 = scalar_lea.vmem %s1, %s178
          %s180 = smul.u32 2, %s24
        $region24: #{tpu_custom_call.1} parent=15 // pred_fallthru
          _
      $region16: #{tpu_custom_call.1} parent=5 // pred_fallthru
        _
      %p181 = scmp.le.s32.totalorder 1, %s16
      %p182 = scmp.lt.s32.totalorder %s16, 3
      %p183 = pnand %p181, %p182
      %p184 = pneg %p183
      // Predicated region
      $region25: #{tpu_custom_call.1} parent=5 // pred_check
        _
      $region26: #{tpu_custom_call.1} parent=5 // pred_check_branch
        %186 = sbr.rel (%p183) target = $region28
      $region27: #{tpu_custom_call.1} parent=5 // pred_region
        %s187 = ssub.s32 %s16, 1
        %s188 = smul.u32 2, %s26
        %p189 = scmp.lt.s32.totalorder %s25, 1
        %s190 = scalar_select %p189, %s25, 1
        %p191 = scmp.lt.s32.totalorder %s188, 1
        %s192 = scalar_select %p191, %s188, 1
        %s193 = smul.addr %s190, 6
        %s194 = sadd.s32 %s192, %s193
        %s195 = smul.addr %s194, 8
        %s196 = scalar_lea.vmem %s0, %s195
        %p197 = pneg %p56
        %p198 = pneg %p53
        %s199 = smul.u32 2, %s26
        %p200 = scmp.lt.s32.totalorder %s25, 1
        %s201 = scalar_select %p200, %s25, 1
        %p202 = scmp.lt.s32.totalorder %s199, 1
        %s203 = scalar_select %p202, %s199, 1
        %s204 = smul.addr %s201, 6
        %s205 = sadd.s32 %s203, %s204
        %s206 = smul.addr %s205, 8
        %s207 = scalar_lea.vmem %s1, %s206
        %p208 = pneg %p84
        %p209 = pneg %p81
        %p210 = pneg %p110
        %p211 = pneg %p107
        %s212 = sand.u32 %s97, 1
        %s213 = scalar_lea.sflag [#allocation5], %s212
        %s214 = sand.u32 %s97, 1
        %s215 = scalar_lea.vmem [#allocation4], %s214
        %p216 = pneg %p136
        %p217 = pneg %p133
        %s218 = sand.u32 %s123, 1
        %s219 = scalar_lea.sflag [#allocation7], %s218
        %s220 = sand.u32 %s123, 1
        %s221 = scalar_lea.vmem [#allocation6], %s220
        %s222 = smul.u32 2, %s26
        %p223 = scmp.lt.s32.totalorder %s25, 1
        %s224 = scalar_select %p223, %s25, 1
        %p225 = scmp.lt.s32.totalorder %s222, 1
        %s226 = scalar_select %p225, %s222, 1
        %s227 = smul.addr %s224, 6
        %s228 = sadd.s32 %s226, %s227
        %s229 = smul.addr %s228, 8
        %s230 = scalar_lea.vmem %s0, %s229
        %s231 = smul.u32 2, %s26
        %s232 = smul.u32 2, %s26
        %p233 = scmp.lt.s32.totalorder %s25, 1
        %s234 = scalar_select %p233, %s25, 1
        %p235 = scmp.lt.s32.totalorder %s232, 1
        %s236 = scalar_select %p235, %s232, 1
        %s237 = smul.addr %s234, 6
        %s238 = sadd.s32 %s236, %s237
        %s239 = smul.addr %s238, 8
        %s240 = scalar_lea.vmem %s1, %s239
        %s241 = smul.u32 2, %s26
        %p242 = scmp.eq.s32.totalorder %s26, 0
        // Predicated region
        $region29: #{tpu_custom_call.1} parent=27 // pred_check
          %p243 = pneg %p242
        $region30: #{tpu_custom_call.1} parent=27 // pred_check_branch
          %245 = sbr.rel (%p243) target = $region32
        $region31: #{tpu_custom_call.1} parent=27 // pred_region
          %v246 = vlaneseq
          %vm247 = vcmp.ge.s32.totalorder %v246, 0
          %vm248 = vcmp.lt.s32.totalorder %v246, 256
          %vm249 = vmand %vm247, %vm248
          %250 = vst.msk [vmem:[#allocation2] sm:$0x3] %vm249, 0.0
          %251 = vst.msk [vmem:[#allocation3] sm:$0x3] %vm249, 0
        $region32: #{tpu_custom_call.1} parent=27 // pred_fallthru
          _
        %v252 = vld [vmem:[%s230] sm:$0xff]
        %v253 = vld [vmem:[%s230 + $0x8] sm:$0xff]
        %v254 = vld [vmem:[%s230 + $0x10] sm:$0xff]
        %v255 = vld [vmem:[%s230 + $0x18] sm:$0xff]
        %v256 = vld [vmem:[%s230 + $0x20] sm:$0x1f]
        %v257 = vld [vmem:[%s230 + $0x28] sm:$0x1f]
        %v258 = vld [vmem:[%s240] sm:$0xff]
        %v259 = vld [vmem:[%s240 + $0x8] sm:$0xff]
        %v260 = vld [vmem:[%s240 + $0x10] sm:$0xff]
        %v261 = vld [vmem:[%s240 + $0x18] sm:$0xff]
        %v262 = vld [vmem:[%s240 + $0x20] sm:$0x1f]
        %v263 = vld [vmem:[%s240 + $0x28] sm:$0x1f]
        %vm264 = vcmask 1044480
        %v265 = vsel %vm264, %v256, -inf
        %v266 = vmax.f32 %v252, %v265
        %v267 = vmax.f32 %v266, %v254
        %v268 = vrot.slane %v267, 4
        %v269 = vmax.f32 %v267, %v268
        %v270 = vrot.slane %v269, 2
        %v271 = vmax.f32 %v269, %v270
        %v272 = vrot.slane %v271, 1
        %v273 = vmax.f32 %v271, %v272
        %v274 = vsel %vm264, %v257, -inf
        %v275 = vmax.f32 %v253, %v274
        %v276 = vmax.f32 %v275, %v255
        %v277 = vrot.slane %v276, 4
        %v278 = vmax.f32 %v276, %v277
        %v279 = vrot.slane %v278, 2
        %v280 = vmax.f32 %v278, %v279
        %v281 = vrot.slane %v280, 1
        %v282 = vmax.f32 %v280, %v281
        %v283 = vsub.f32 %v252, %v273
        %v284 = vsub.f32 %v253, %v282
        %v285 = vsub.f32 %v254, %v273
        %v286 = vsub.f32 %v255, %v282
        %v287 = vsub.f32 %v256, %v273
        %v288 = vsub.f32 %v257, %v282
        %v289 = vmul.f32 %v283, 1.442695
        %v290 = vpow.pop %v289
        %v291 = vmul.f32 %v284, 1.442695
        %v292 = vpow.pop %v291
        %v293 = vmul.f32 %v285, 1.442695
        %v294 = vpow.pop %v293
        %v295 = vmul.f32 %v286, 1.442695
        %v296 = vpow.pop %v295
        %v297 = vmul.f32 %v287, 1.442695
        %v298 = vpow.pop %v297
        %v299 = vmul.f32 %v288, 1.442695
        %v300 = vpow.pop %v299
        %v301 = vadd.f32 %v290, %v294
        %v302 = vsel %vm264, %v298, 0.0
        %v303 = vadd.f32 %v301, %v302
        %v304 = vrot.slane %v303, 4
        %v305 = vadd.f32 %v303, %v304
        %v306 = vrot.slane %v305, 2
        %v307 = vadd.f32 %v305, %v306
        %v308 = vrot.slane %v307, 1
        %v309 = vadd.f32 %v307, %v308
        %v310 = vadd.f32 %v292, %v296
        %v311 = vsel %vm264, %v300, 0.0
        %v312 = vadd.f32 %v310, %v311
        %v313 = vrot.slane %v312, 4
        %v314 = vadd.f32 %v312, %v313
        %v315 = vrot.slane %v314, 2
        %v316 = vadd.f32 %v314, %v315
        %v317 = vrot.slane %v316, 1
        %v318 = vadd.f32 %v316, %v317
        %v319 = vxor.u32 %v258, 2147483648
        %v320 = vxor.u32 %v259, 2147483648
        %v321 = vxor.u32 %v260, 2147483648
        %v322 = vxor.u32 %v261, 2147483648
        %v323 = vxor.u32 %v262, 2147483648
        %v324 = vxor.u32 %v263, 2147483648
        %v325 = vmul.f32 %v319, 1.442695
        %v326 = vpow.pop %v325
        %v327 = vmul.f32 %v320, 1.442695
        %v328 = vpow.pop %v327
        %v329 = vmul.f32 %v321, 1.442695
        %v330 = vpow.pop %v329
        %v331 = vmul.f32 %v322, 1.442695
        %v332 = vpow.pop %v331
        %v333 = vmul.f32 %v323, 1.442695
        %v334 = vpow.pop %v333
        %v335 = vmul.f32 %v324, 1.442695
        %v336 = vpow.pop %v335
        %v337 = vadd.f32 %v326, 1.0
        %v338 = vadd.f32 %v328, 1.0
        %v339 = vadd.f32 %v330, 1.0
        %v340 = vadd.f32 %v332, 1.0
        %v341 = vadd.f32 %v334, 1.0
        %v342 = vadd.f32 %v336, 1.0
        %v343 = vrcp.pop %v337
        %v344 = vmul.f32 %v337, %v343
        %v345 = vsub.f32 1.0, %v344
        %v346 = vmul.f32 %v343, %v345
        %v347 = vadd.f32 %v343, %v346
        %vm348 = vweird.f32 %v337
        %vm349 = vweird.f32 %v343
        %vm350 = vmor %vm348, %vm349
        %v351 = vsel %vm350, %v343, %v347
        %v352 = vand.u32 2147483647, %v337
        %vm353 = vcmp.eq.f32.partialorder %v352, 8.507059e+37
        %v354 = vand.u32 %v337, 2147483648
        %v355 = vor.u32 1.1754944e-38, %v354
        %v356 = vsel %vm353, %v355, %v351
        %v357 = vmul.f32 1.0, %v356
        %v358 = vrcp.pop %v338
        %v359 = vmul.f32 %v338, %v358
        %v360 = vsub.f32 1.0, %v359
        %v361 = vmul.f32 %v358, %v360
        %v362 = vadd.f32 %v358, %v361
        %vm363 = vweird.f32 %v338
        %vm364 = vweird.f32 %v358
        %vm365 = vmor %vm363, %vm364
        %v366 = vsel %vm365, %v358, %v362
        %v367 = vand.u32 2147483647, %v338
        %vm368 = vcmp.eq.f32.partialorder %v367, 8.507059e+37
        %v369 = vand.u32 %v338, 2147483648
        %v370 = vor.u32 1.1754944e-38, %v369
        %v371 = vsel %vm368, %v370, %v366
        %v372 = vmul.f32 1.0, %v371
        %v373 = vrcp.pop %v339
        %v374 = vmul.f32 %v339, %v373
        %v375 = vsub.f32 1.0, %v374
        %v376 = vmul.f32 %v373, %v375
        %v377 = vadd.f32 %v373, %v376
        %vm378 = vweird.f32 %v339
        %vm379 = vweird.f32 %v373
        %vm380 = vmor %vm378, %vm379
        %v381 = vsel %vm380, %v373, %v377
        %v382 = vand.u32 2147483647, %v339
        %vm383 = vcmp.eq.f32.partialorder %v382, 8.507059e+37
        %v384 = vand.u32 %v339, 2147483648
        %v385 = vor.u32 1.1754944e-38, %v384
        %v386 = vsel %vm383, %v385, %v381
        %v387 = vmul.f32 1.0, %v386
        %v388 = vrcp.pop %v340
        %v389 = vmul.f32 %v340, %v388
        %v390 = vsub.f32 1.0, %v389
        %v391 = vmul.f32 %v388, %v390
        %v392 = vadd.f32 %v388, %v391
        %vm393 = vweird.f32 %v340
        %vm394 = vweird.f32 %v388
        %vm395 = vmor %vm393, %vm394
        %v396 = vsel %vm395, %v388, %v392
        %v397 = vand.u32 2147483647, %v340
        %vm398 = vcmp.eq.f32.partialorder %v397, 8.507059e+37
        %v399 = vand.u32 %v340, 2147483648
        %v400 = vor.u32 1.1754944e-38, %v399
        %v401 = vsel %vm398, %v400, %v396
        %v402 = vmul.f32 1.0, %v401
        %v403 = vrcp.pop %v341
        %v404 = vmul.f32 %v341, %v403
        %v405 = vsub.f32 1.0, %v404
        %v406 = vmul.f32 %v403, %v405
        %v407 = vadd.f32 %v403, %v406
        %vm408 = vweird.f32 %v341
        %vm409 = vweird.f32 %v403
        %vm410 = vmor %vm408, %vm409
        %v411 = vsel %vm410, %v403, %v407
        %v412 = vand.u32 2147483647, %v341
        %vm413 = vcmp.eq.f32.partialorder %v412, 8.507059e+37
        %v414 = vand.u32 %v341, 2147483648
        %v415 = vor.u32 1.1754944e-38, %v414
        %v416 = vsel %vm413, %v415, %v411
        %v417 = vmul.f32 1.0, %v416
        %v418 = vrcp.pop %v342
        %v419 = vmul.f32 %v342, %v418
        %v420 = vsub.f32 1.0, %v419
        %v421 = vmul.f32 %v418, %v420
        %v422 = vadd.f32 %v418, %v421
        %vm423 = vweird.f32 %v342
        %vm424 = vweird.f32 %v418
        %vm425 = vmor %vm423, %vm424
        %v426 = vsel %vm425, %v418, %v422
        %v427 = vand.u32 2147483647, %v342
        %vm428 = vcmp.eq.f32.partialorder %v427, 8.507059e+37
        %v429 = vand.u32 %v342, 2147483648
        %v430 = vor.u32 1.1754944e-38, %v429
        %v431 = vsel %vm428, %v430, %v426
        %v432 = vmul.f32 1.0, %v431
        %v433 = vmul.f32 %v357, %v290
        %v434 = vmul.f32 %v372, %v292
        %v435 = vmul.f32 %v387, %v294
        %v436 = vmul.f32 %v402, %v296
        %v437 = vmul.f32 %v417, %v298
        %v438 = vmul.f32 %v432, %v300
        %v439 = vadd.f32 %v433, %v435
        %v440 = vsel %vm264, %v437, 0.0
        %v441 = vadd.f32 %v439, %v440
        %v442 = vrot.slane %v441, 4
        %v443 = vadd.f32 %v441, %v442
        %v444 = vrot.slane %v443, 2
        %v445 = vadd.f32 %v443, %v444
        %v446 = vrot.slane %v445, 1
        %v447 = vadd.f32 %v445, %v446
        %v448 = vadd.f32 %v434, %v436
        %v449 = vsel %vm264, %v438, 0.0
        %v450 = vadd.f32 %v448, %v449
        %v451 = vrot.slane %v450, 4
        %v452 = vadd.f32 %v450, %v451
        %v453 = vrot.slane %v452, 2
        %v454 = vadd.f32 %v452, %v453
        %v455 = vrot.slane %v454, 1
        %v456 = vadd.f32 %v454, %v455
        %v457 = vmul.f32 %v433, %v283
        %v458 = vmul.f32 %v434, %v284
        %v459 = vmul.f32 %v435, %v285
        %v460 = vmul.f32 %v436, %v286
        %v461 = vmul.f32 %v437, %v287
        %v462 = vmul.f32 %v438, %v288
        %v463 = vadd.f32 %v457, %v459
        %v464 = vsel %vm264, %v461, 0.0
        %v465 = vadd.f32 %v463, %v464
        %v466 = vrot.slane %v465, 4
        %v467 = vadd.f32 %v465, %v466
        %v468 = vrot.slane %v467, 2
        %v469 = vadd.f32 %v467, %v468
        %v470 = vrot.slane %v469, 1
        %v471 = vadd.f32 %v469, %v470
        %v472 = vadd.f32 %v458, %v460
        %v473 = vsel %vm264, %v462, 0.0
        %v474 = vadd.f32 %v472, %v473
        %v475 = vrot.slane %v474, 4
        %v476 = vadd.f32 %v474, %v475
        %v477 = vrot.slane %v476, 2
        %v478 = vadd.f32 %v476, %v477
        %v479 = vrot.slane %v478, 1
        %v480 = vadd.f32 %v478, %v479
        %v481 = vlog2.pop %v309
        %v482 = vmul.f32 %v481, 0.6931472
        %v483 = vlog2.pop %v318
        %v484 = vmul.f32 %v483, 0.6931472
        %v485 = vmul.f32 %v482, %v447
        %v486 = vmul.f32 %v484, %v456
        %v487 = vsub.f32 %v471, %v485
        %v488 = vsub.f32 %v480, %v486
        %v489 = vrcp.pop %v309
        %v490 = vmul.f32 %v309, %v489
        %v491 = vsub.f32 1.0, %v490
        %v492 = vmul.f32 %v489, %v491
        %v493 = vadd.f32 %v489, %v492
        %vm494 = vweird.f32 %v309
        %vm495 = vweird.f32 %v489
        %vm496 = vmor %vm494, %vm495
        %v497 = vsel %vm496, %v489, %v493
        %v498 = vand.u32 2147483647, %v309
        %vm499 = vcmp.eq.f32.partialorder %v498, 8.507059e+37
        %v500 = vand.u32 %v309, 2147483648
        %v501 = vor.u32 1.1754944e-38, %v500
        %v502 = vsel %vm499, %v501, %v497
        %v503 = vmul.f32 %v487, %v502
        %v504 = vrcp.pop %v318
        %v505 = vmul.f32 %v318, %v504
        %v506 = vsub.f32 1.0, %v505
        %v507 = vmul.f32 %v504, %v506
        %v508 = vadd.f32 %v504, %v507
        %vm509 = vweird.f32 %v318
        %vm510 = vweird.f32 %v504
        %vm511 = vmor %vm509, %vm510
        %v512 = vsel %vm511, %v504, %v508
        %v513 = vand.u32 2147483647, %v318
        %vm514 = vcmp.eq.f32.partialorder %v513, 8.507059e+37
        %v515 = vand.u32 %v318, 2147483648
        %v516 = vor.u32 1.1754944e-38, %v515
        %v517 = vsel %vm514, %v516, %v512
        %v518 = vmul.f32 %v488, %v517
        %p519 = scmp.lt.s32.totalorder %s26, 0
        // Predicated region
        $region33: #{tpu_custom_call.1} parent=27 // pred_check
          %p520 = pneg %p519
        $region34: #{tpu_custom_call.1} parent=27 // pred_check_branch
          %522 = sbr.rel (%p520) target = $region36
        $region35: #{tpu_custom_call.1} parent=27 // pred_region
          %v523 = vld [vmem:[#allocation2] sm:$0x3]
          %v526 = vrot.slane %v518, 7
          %vm527 = vcmask 1040384
          %v528 = vsel %vm527, %v503, %v526
          %v530 = vadd.f32 %v523, %v528
          %v531 = vlaneseq
          %vm532 = vcmp.ge.s32.totalorder %v531, 0
          %vm533 = vcmp.lt.s32.totalorder %v531, 256
          %vm534 = vmand %vm532, %vm533
          %535 = vst.msk [vmem:[#allocation2] sm:$0x3] %vm534, %v530
          %v536 = vld [vmem:[#allocation3] sm:$0x3]
          %vm537 = vcmp.ne.f32.partialorder %v503, 0.0
          %vm538 = vcmp.ne.f32.partialorder %v518, 0.0
          %v539 = vsel %vm537, 1, 0
          %v540 = vsel %vm538, 1, 0
          %v541 = vrot.slane %v540, 7
          %v542 = vsel %vm527, %v539, %v541
          %v543 = vadd.s32 %v536, %v542
          %544 = vst.msk [vmem:[#allocation3] sm:$0x3] %vm534, %v543
        $region36: #{tpu_custom_call.1} parent=27 // pred_fallthru
          _
        // Predicated region
        $region37: #{tpu_custom_call.1} parent=27 // pred_check
          %p545 = pneg %p242
        $region38: #{tpu_custom_call.1} parent=27 // pred_check_branch
          %547 = sbr.rel (%p545) target = $region40
        $region39: #{tpu_custom_call.1} parent=27 // pred_region
          %v548 = vld [vmem:[#allocation2] sm:$0x3]
          %v551 = vrot.slane %v518, 7
          %vm552 = vcmask 1040384
          %v553 = vsel %vm552, %v503, %v551
          %v555 = vadd.f32 %v548, %v553
          %v556 = vlaneseq
          %vm557 = vcmp.ge.s32.totalorder %v556, 0
          %vm558 = vcmp.lt.s32.totalorder %v556, 256
          %vm559 = vmand %vm557, %vm558
          %560 = vst.msk [vmem:[#allocation2] sm:$0x3] %vm559, %v555
          %v561 = vld [vmem:[#allocation3] sm:$0x3]
          %vm562 = vcmp.ne.f32.partialorder %v503, 0.0
          %vm563 = vcmp.ne.f32.partialorder %v518, 0.0
          %v564 = vsel %vm562, 1, 0
          %v565 = vsel %vm563, 1, 0
          %v566 = vrot.slane %v565, 7
          %v567 = vsel %vm552, %v564, %v566
          %v568 = vadd.s32 %v561, %v567
          %569 = vst.msk [vmem:[#allocation3] sm:$0x3] %vm559, %v568
          %v570 = vld [vmem:[#allocation2] sm:$0x3]
          %v572 = vperm.slane %v570, 0
          %v573 = vperm.slane %v570, 1
          %v576 = vsel %vm552, %v572, 0.0
          %v577 = vsel %vm552, %v573, 0.0
          %v578 = vadd.f32 %v576, %v577
          %579 = vadd.xlane.f32.xlu0 %v578
          %v580 = vpop.xlane.xlu0 %579
          %v581 = vrot.slane %v580, 4
          %v582 = vadd.f32 %v580, %v581
          %v583 = vrot.slane %v582, 2
          %v584 = vadd.f32 %v582, %v583
          %v585 = vrot.slane %v584, 1
          %v586 = vadd.f32 %v584, %v585
          %s587 = vtos %v586
          %v588 = vstv %s587
          %589 = vst [vmem:[%s215] sm:$0x1] %v588
          %v590 = vld [vmem:[#allocation3] sm:$0x3]
          %v591 = vperm.slane %v590, 0
          %v592 = vperm.slane %v590, 1
          %v593 = vsel %vm552, %v591, 0
          %v594 = vsel %vm552, %v592, 0
          %v595 = vadd.s32 %v593, %v594
          %v596 = vand.u32 %v595, 65535
          %v597 = vshrl.u32 %v595, 16
          %v598 = vcvt.s32.f32 %v596
          %v599 = vcvt.s32.f32 %v597
          %600 = vadd.xlane.f32.xlu0 %v598
          %v601 = vpop.xlane.xlu0 %600
          %602 = vadd.xlane.f32.xlu0 %v599
          %v603 = vpop.xlane.xlu0 %602
          %v604 = vcvt.f32.s32 %v601
          %v605 = vcvt.f32.s32 %v603
          %v606 = vshll.u32 %v605, 16
          %v607 = vadd.s32 %v606, %v604
          %v608 = vrot.slane %v607, 4
          %v609 = vadd.s32 %v607, %v608
          %v610 = vrot.slane %v609, 2
          %v611 = vadd.s32 %v609, %v610
          %v612 = vrot.slane %v611, 1
          %v613 = vadd.s32 %v611, %v612
          %s614 = vtos %v613
          %v615 = vstv %s614
          %616 = vst [vmem:[%s221] sm:$0x1] %v615
        $region40: #{tpu_custom_call.1} parent=27 // pred_fallthru
          _
        %s617 = sand.u32 %s97, 1
        %s618 = scalar_lea.sflag [#allocation5], %s617
        %s619 = sand.u32 %s97, 1
        %s620 = scalar_lea.vmem [#allocation4], %s619
        %s621 = sand.u32 %s123, 1
        %s622 = scalar_lea.sflag [#allocation7], %s621
        %s623 = sand.u32 %s123, 1
        %s624 = scalar_lea.vmem [#allocation6], %s623
        // Predicated region
        $region41: #{tpu_custom_call.1} parent=27 // pred_check
          %p625 = pneg %p107
        $region42: #{tpu_custom_call.1} parent=27 // pred_check_branch
          %627 = sbr.rel (%p625) target = $region44
        $region43: #{tpu_custom_call.1} parent=27 // pred_region
          %629 = vsyncadd %s618, 0
          %s630 = scalar_lea.hbm %s2, %s25
          %s632 = sshll.u32 %s620, 4
          %s633 = int_to_ptr.vmem [resolvable:$true] %s632
          %s634 = sshll.u32 %s630, 4
          %s635 = int_to_ptr.hbm [resolvable:$true] %s634
          %637 = dma.vmem_to_hbm [thread:$0]  %s633, 16, %s635, %s618
        $region44: #{tpu_custom_call.1} parent=27 // pred_fallthru
          _
        // Predicated region
        $region45: #{tpu_custom_call.1} parent=27 // pred_check
          %p638 = pneg %p133
        $region46: #{tpu_custom_call.1} parent=27 // pred_check_branch
          %640 = sbr.rel (%p638) target = $region48
        $region47: #{tpu_custom_call.1} parent=27 // pred_region
          %642 = vsyncadd %s622, 0
          %s643 = scalar_lea.hbm %s3, %s25
          %s645 = sshll.u32 %s624, 4
          %s646 = int_to_ptr.vmem [resolvable:$true] %s645
          %s647 = sshll.u32 %s643, 4
          %s648 = int_to_ptr.hbm [resolvable:$true] %s647
          %650 = dma.vmem_to_hbm [thread:$0]  %s646, 16, %s648, %s622
        $region48: #{tpu_custom_call.1} parent=27 // pred_fallthru
          _
      $region28: #{tpu_custom_call.1} parent=5 // pred_fallthru
        _
      %p651 = scmp.le.s32.totalorder 2, %s16
      // Predicated region
      $region49: #{tpu_custom_call.1} parent=5 // pred_check
        %p652 = pneg %p651
      $region50: #{tpu_custom_call.1} parent=5 // pred_check_branch
        %654 = sbr.rel (%p652) target = $region52
      $region51: #{tpu_custom_call.1} parent=5 // pred_region
        %s655 = ssub.s32 %s16, 2
        // Predicated region
        $region53: #{tpu_custom_call.1} parent=51 // pred_check
          %p656 = pneg %p113
        $region54: #{tpu_custom_call.1} parent=51 // pred_check_branch
          %658 = sbr.rel (%p656) target = $region56
        $region55: #{tpu_custom_call.1} parent=51 // pred_region
          %s659 = sand.u32 %s98, 1
          %s660 = scalar_lea.sflag [#allocation5], %s659
          %s661 = sand.u32 %s98, 1
          %s662 = scalar_lea.vmem [#allocation4], %s661
          %664 = dma.done %s660, 16
        $region56: #{tpu_custom_call.1} parent=51 // pred_fallthru
          _
        // Predicated region
        $region57: #{tpu_custom_call.1} parent=51 // pred_check
          %p665 = pneg %p139
        $region58: #{tpu_custom_call.1} parent=51 // pred_check_branch
          %667 = sbr.rel (%p665) target = $region60
        $region59: #{tpu_custom_call.1} parent=51 // pred_region
          %s668 = sand.u32 %s124, 1
          %s669 = scalar_lea.sflag [#allocation7], %s668
          %s670 = sand.u32 %s124, 1
          %s671 = scalar_lea.vmem [#allocation6], %s670
          %673 = dma.done %s669, 16
        $region60: #{tpu_custom_call.1} parent=51 // pred_fallthru
          _
      $region52: #{tpu_custom_call.1} parent=5 // pred_fallthru
        _
    $region6: #{tpu_custom_call.1} parent=1 // loop_footer
      %s20 = sadd.s32 1, %s16
    $region7: #{tpu_custom_call.1} parent=1 // loop_footer_branch
      %15 = sbr.rel target = $region3
    $region8: #{tpu_custom_call.1} parent=1 // loop_exit
      _
    %674 = vsyncpa [#allocation5], 1
    %s675 = scalar_lea.sflag [#allocation5], 1
    %676 = vsyncpa %s675, 1
    %677 = vsyncpa [#allocation7], 1
    %s678 = scalar_lea.sflag [#allocation7], 1
    %679 = vsyncpa %s678, 1

</llo_original>
